<compile_context>
chip_gen: v6e
topology: v6e:2x2x1
jax: 0.10.0
libtpu: 0.0.40
codegen_flags: <defaults>
</compile_context>

<pallas_src>
import functools

import jax
import jax.numpy as jnp
import numpy as np
from jax import lax
from jax.experimental import pallas as pl
from jax.experimental.pallas import tpu as pltpu

# ----- synthetic config (matches the module's config object) -----
NUM_TASKS = 4
NUM_EXPERTS = 8
TOPK = 2
W_EX = 0.01
EPS = 0.0001


# --------------------------------------------------------------------------
# Kernel: accumulate per-(core, task, expert) sums of routing probabilities.
# --------------------------------------------------------------------------
def _gate_accum_kernel(logits_ref, labels_ref, gate_ref, *, num_tasks, tile_n,
                       tiles_per_core, n_tokens, need_mask, mxu_dtype):
    # logits_ref: [E, TILE_N] native dtype (experts on sublanes, tokens on the
    # 128-wide lane axis), labels_ref: [1, TILE_N] int, gate_ref: [T, E] f32
    # (output block, resident across the inner "arbitrary" axis).
    c = pl.program_id(0)   # core / token-half (parallel)
    i = pl.program_id(1)   # token tile within this core's range (arbitrary)

    @pl.when(i == 0)
    def _init():
        gate_ref[...] = jnp.zeros_like(gate_ref)

    x = logits_ref[...].astype(jnp.float32)                        # [E, TN]
    if need_mask:
        # Ragged tail / over-hang tiles: mask columns whose *unclamped* global
        # token index is out of range.  Sanitizing x keeps NaN/Inf garbage of a
        # partial block out of the MXU accumulate.
        base = (c * tiles_per_core + i) * tile_n
        col = base + lax.broadcasted_iota(jnp.int32, (1, tile_n), 1)
        valid = col < n_tokens                                     # [1, TN]
        x = jnp.where(valid, x, 0.0)

    # Softmax over experts (sublane axis); tokens stay lane-dense.
    m = jnp.max(x, axis=0, keepdims=True)                          # [1, TN]
    e = jnp.exp(x - m)                                             # EUP
    inv_denom = pl.reciprocal(jnp.sum(e, axis=0, keepdims=True))   # exact

    # Scaled one-hot: nonzero entries carry 1/denom, so contracting against the
    # raw exponentials below yields sum_k onehot * softmax without ever forming
    # the [E, TILE] probs array (review item 4).
    labels = labels_ref[...].astype(jnp.int32)                     # [1, TN]
    task_ids = lax.broadcasted_iota(jnp.int32, (num_tasks, 1), 0)  # [T, 1]
    match = labels == task_ids                                     # [T, TN]
    if need_mask:
        match = jnp.logical_and(match, valid)
    onehot_scaled = jnp.where(match, inv_denom, 0.0)               # [T, TN] f32

    # One MXU pass per tile over the long, lane-dense token axis.
    gate_ref[...] += lax.dot_general(
        onehot_scaled.astype(mxu_dtype), e.astype(mxu_dtype),
        dimension_numbers=(((1,), (1,)), ((), ())),
        preferred_element_type=jnp.float32)                        # [T, E]


# --------------------------------------------------------------------------
# Wrapper
# --------------------------------------------------------------------------
def _vmem_budget():
    """Per-generation (max token tile, scoped-VMEM limit)."""
    try:
        vmem_cap = pltpu.get_tpu_info().vmem_capacity_bytes
    except Exception:
        vmem_cap = 64 << 20                      # conservative fallback
    if vmem_cap >= (96 << 20):                   # v5e / v6e: 128 MiB physical
        return 128 * 1024, 64 << 20
    return 64 * 1024, 48 << 20                   # v7x: 64 MiB physical


def _accumulate_gate(logits_en, labels, *, num_tasks, max_tile_n, mxu_dtype):
    """Returns summed [num_tasks, num_experts] per-task softmax-probability sums."""
    logits_en = logits_en.reshape(logits_en.shape[0], -1)   # free: collapse trailing dims
    num_experts, n = logits_en.shape
    assert labels.shape[0] == n, (labels.shape, n)

    default_tile, vmem_limit = _vmem_budget()
    if max_tile_n is None:
        max_tile_n = default_tile
    max_tile_n = max(128, (max_tile_n // 128) * 128)

    # Single full-extent block when everything fits (always layout-legal),
    # otherwise 128-multiple tiles with in-kernel tail masking — no jnp.pad.
    tile_n = n if n <= max_tile_n else max_tile_n
    tiles_total = pl.cdiv(n, tile_n)

    # Leading "parallel" axis over token halves: splits across the 2 TCs on
    # v7x megacore; on 1-TC chips it is just two sequential outer steps.
    num_cores = 2 if tiles_total >= 2 else 1
    tiles_per_core = pl.cdiv(tiles_total, num_cores)
    need_mask = (num_cores * tiles_per_core * tile_n != n)

    if num_cores * tiles_per_core == tiles_total:
        data_idx = lambda c, i: (0, c * tiles_per_core + i)
    else:
        # Over-hang tiles clamp to the last real tile; their columns are fully
        # masked in-kernel (mask uses the unclamped index), so they add zero.
        last = tiles_total - 1
        data_idx = lambda c, i: (0, jnp.minimum(c * tiles_per_core + i, last))

    labels_row = labels.reshape(1, n)   # metadata-only reshape; dtype kept as given

    kernel = functools.partial(
        _gate_accum_kernel, num_tasks=num_tasks, tile_n=tile_n,
        tiles_per_core=tiles_per_core, n_tokens=n, need_mask=need_mask,
        mxu_dtype=mxu_dtype)

    partials = pl.pallas_call(
        kernel,
        out_shape=jax.ShapeDtypeStruct((num_cores, num_tasks, num_experts),
                                       jnp.float32),
        grid=(num_cores, tiles_per_core),
        in_specs=[
            pl.BlockSpec((num_experts, tile_n), data_idx),   # logits, native dtype
            pl.BlockSpec((1, tile_n), data_idx),             # labels (any int dtype)
        ],
        out_specs=pl.BlockSpec((None, num_tasks, num_experts),
                               lambda c, i: (c, 0, 0)),
        compiler_params=pltpu.CompilerParams(
            dimension_semantics=("parallel", "arbitrary"),
            vmem_limit_bytes=vmem_limit),
    )(logits_en, labels_row)

    return jnp.sum(partials, axis=0)                         # [T, E]


def mi_loss(router_logits_en, router_labels, *, ex_task_gate=None,
            num_tasks=NUM_TASKS, topk=TOPK, w_ex=W_EX, eps=EPS,
            max_tile_n=None, mxu_dtype=jnp.bfloat16):
    """Mutual-information routing loss.

    router_logits_en: [num_experts, N] logits (expert-major, lane-dense) or a
        tuple of such arrays (one per MoE layer).  Emit logits in this layout
        upstream (e.g. W[E,D] @ x[D,N]) to avoid an HBM transpose pass.
    router_labels: [N] integer task ids in [0, num_tasks).  Pass int8 next to
        bf16 logits to shrink the label stream (the kernel upcasts in-VMEM).
    ex_task_gate: optional [num_tasks, num_experts] prior buffer (the PyTorch
        module's persistent EX_task_gate); defaults to zeros.
    """
    layers = (router_logits_en if isinstance(router_logits_en, (tuple, list))
              else (router_logits_en,))
    labels = router_labels.reshape(-1)

    gate = None
    for lg in layers:
        g = _accumulate_gate(lg, labels, num_tasks=num_tasks,
                             max_tile_n=max_tile_n, mxu_dtype=mxu_dtype)
        gate = g if gate is None else gate + g

    # Tiny [T, E] finalize in plain JAX (per review): counts come from the row
    # sums of the accumulated gate matrix (softmax rows sum to 1), which also
    # reproduces the PyTorch per-occurrence update (count_t * per-task sum).
    num_layers = len(layers)
    counts = jnp.round(jnp.sum(gate, axis=1, keepdims=True) / num_layers)  # [T, 1]
    prior = (jnp.zeros_like(gate) if ex_task_gate is None
             else ex_task_gate.astype(jnp.float32))
    ex = prior + counts * gate
    tot = jnp.sum(ex) / topk
    ex = ex / (tot + eps)
    p_ti = jnp.sum(ex, axis=1, keepdims=True) + eps
    p_ei = jnp.sum(ex, axis=0, keepdims=True) + eps
    expert_loss = -jnp.sum(ex * jnp.log(ex / p_ti / p_ei + eps))
    return w_ex * expert_loss


def mi_loss_token_major(router_logits, router_labels, **kwargs):
    """Drop-in for [..., num_experts] logits.  NOTE: the transpose below costs
    one extra HBM read+write of the logits; prefer emitting expert-major logits
    upstream and calling mi_loss() directly."""
    if isinstance(router_logits, (tuple, list)):
        layers = tuple(l.reshape(-1, l.shape[-1]).T for l in router_logits)
    else:
        layers = router_logits.reshape(-1, router_logits.shape[-1]).T
    return mi_loss(layers, router_labels, **kwargs)


# --------------------------------------------------------------------------
# Pure-numpy reference mirroring the PyTorch module.
# --------------------------------------------------------------------------
def ref_mi_loss(layer_logits_ne, router_labels, prior=None):
    labels = np.asarray(router_labels).reshape(-1)
    ex = (np.zeros((NUM_TASKS, NUM_EXPERTS), np.float32) if prior is None
          else np.array(prior, np.float32))
    for logits in layer_logits_ne:
        logits = np.asarray(logits, np.float32).reshape(-1, NUM_EXPERTS)
        m = logits.max(-1, keepdims=True)
        e = np.exp(logits - m)
        probs = e / e.sum(-1, keepdims=True)
        for t in labels:  # iterates over every occurrence, like the PyTorch loop
            ex[int(t)] += probs[labels == t].sum(0)
    tot = ex.sum() / TOPK
    exg = ex / (tot + EPS)
    pti = exg.sum(1, keepdims=True) + EPS
    pei = exg.sum(0, keepdims=True) + EPS
    return np.float32(W_EX) * -(exg * np.log(exg / pti / pei + EPS)).sum()


if __name__ == "__main__":
    key = jax.random.PRNGKey(0)
    k1, k2, k3, k4, k5 = jax.random.split(key, 5)

    # ---- case 1: module-shaped small input (batch=2, seq=64 -> N=128) ------
    # Producer emits expert-major logits directly: W[E, D] @ x[D, N].
    n1, dmodel = 2 * 64, 32
    w = jax.random.normal(k1, (NUM_EXPERTS, dmodel), dtype=jnp.float32)
    xact = jax.random.normal(k2, (dmodel, n1), dtype=jnp.float32)
    logits_en = (w @ xact) / np.sqrt(dmodel)                     # [E, N]
    labels1 = jax.random.randint(k3, (n1,), 0, NUM_TASKS, dtype=jnp.int32)

    loss1 = jax.block_until_ready(mi_loss(logits_en, labels1))
    ref1 = ref_mi_loss([np.asarray(logits_en).T], np.asarray(labels1))
    # bf16 MXU operands trade ~1% accuracy for 3-6x fewer MXU passes
    # (mxu_dtype=jnp.float32 restores near-exactness).
    assert np.allclose(np.asarray(loss1), ref1, rtol=5e-2, atol=1e-4), (loss1, ref1)

    # ---- case 2: tiled path (ragged N, 2 layers, bf16 logits, small tiles,
    #              nonzero prior buffer; exercises masking/clamp/partial blocks)
    n2 = 1200
    la = jax.random.normal(k4, (NUM_EXPERTS, n2), dtype=jnp.float32).astype(jnp.bfloat16)
    lb = (0.5 * jax.random.normal(k5, (NUM_EXPERTS, n2), dtype=jnp.float32)).astype(jnp.bfloat16)
    labels2 = jax.random.randint(k1, (n2,), 0, NUM_TASKS, dtype=jnp.int32)
    prior = 0.1 * jnp.arange(NUM_TASKS * NUM_EXPERTS,
                             dtype=jnp.float32).reshape(NUM_TASKS, NUM_EXPERTS)

    loss2 = jax.block_until_ready(
        mi_loss((la, lb), labels2, ex_task_gate=prior, max_tile_n=256))
    ref2 = ref_mi_loss([np.asarray(la, np.float32).T, np.asarray(lb, np.float32).T],
                       np.asarray(labels2), prior=np.asarray(prior))
    assert np.allclose(np.asarray(loss2), ref2, rtol=5e-2, atol=1e-4), (loss2, ref2)

    print("KERNEL_OK")
</pallas_src>

<mosaic_0001>
module attributes {stable_mosaic.version = 11 : i64} {
  func.func @_gate_accum_kernel(%arg0: i32, %arg1: i32, %arg2: memref<8x128xf32, #tpu.memory_space<vmem>>, %arg3: memref<1x128xi32, #tpu.memory_space<vmem>>, %arg4: memref<1x4x8xf32, #tpu.memory_space<vmem>>) attributes {dimension_semantics = [#tpu.dimension_semantics<parallel>, #tpu.dimension_semantics<arbitrary>], iteration_bounds = array<i64: 1, 1>, scalar_prefetch = 0 : i64, scratch_operands = 0 : i64, tpu.core_type = #tpu.core_type<tc>, window_params = [{transform_indices = @transform_0, window_bounds = array<i64: 8, 128>}, {transform_indices = @transform_1, window_bounds = array<i64: 1, 128>}, {transform_indices = @transform_2, window_bounds = array<i64: 1, 4, 8>}]} {
    %c0_i32 = arith.constant 0 : i32
    %0 = arith.cmpi eq, %arg1, %c0_i32 : i32
    %1 = arith.extui %0 : i1 to i32
    %c0_i32_0 = arith.constant 0 : i32
    %2 = arith.cmpi ne, %1, %c0_i32_0 : i32
    scf.if %2 {
      %cst_13 = arith.constant 0.000000e+00 : f32
      %30 = vector.broadcast %cst_13 : f32 to vector<4x8xf32>
      %c0_14 = arith.constant 0 : index
      %c0_15 = arith.constant 0 : index
      %c0_16 = arith.constant 0 : index
      %31 = vector.load %arg4[%c0_14, %c0_15, %c0_16] : memref<1x4x8xf32, #tpu.memory_space<vmem>>, vector<1x4x8xf32>
      %32 = vector.shape_cast %31 : vector<1x4x8xf32> to vector<4x8xf32>
      %33 = vector.shape_cast %30 : vector<4x8xf32> to vector<1x4x8xf32>
      tpu.vector_store %arg4[%c0_14, %c0_15, %c0_16], %33 {strides = array<i32>} : memref<1x4x8xf32, #tpu.memory_space<vmem>>, vector<1x4x8xf32>,
    } else {
    }
    %c0 = arith.constant 0 : index
    %c0_1 = arith.constant 0 : index
    %3 = vector.load %arg2[%c0, %c0_1] : memref<8x128xf32, #tpu.memory_space<vmem>>, vector<8x128xf32>
    %cst = arith.constant dense<0xFF800000> : vector<128xf32>
    %4 = vector.multi_reduction <maximumf>, %3, %cst [0] : vector<8x128xf32> to vector<128xf32>
    %5 = vector.shape_cast %4 : vector<128xf32> to vector<1x128xf32>
    %6 = vector.broadcast %5 : vector<1x128xf32> to vector<8x128xf32>
    %7 = arith.subf %3, %6 : vector<8x128xf32>
    %8 = math.exp %7 : vector<8x128xf32>
    %cst_2 = arith.constant dense<0.000000e+00> : vector<128xf32>
    %9 = vector.multi_reduction <add>, %8, %cst_2 [0] : vector<8x128xf32> to vector<128xf32>
    %10 = vector.shape_cast %9 : vector<128xf32> to vector<1x128xf32>
    %11 = tpu.reciprocal %10 : vector<1x128xf32> -> vector<1x128xf32>
    %c0_3 = arith.constant 0 : index
    %c0_4 = arith.constant 0 : index
    %12 = vector.load %arg3[%c0_3, %c0_4] : memref<1x128xi32, #tpu.memory_space<vmem>>, vector<1x128xi32>
    %13 = tpu.iota {dimensions = array<i32: 0>} : vector<4x1xi32>
    %14 = vector.broadcast %12 : vector<1x128xi32> to vector<4x128xi32>
    %15 = vector.broadcast %13 : vector<4x1xi32> to vector<4x128xi32>
    %16 = arith.cmpi eq, %14, %15 : vector<4x128xi32>
    %cst_5 = arith.constant 0.000000e+00 : f32
    %17 = vector.shape_cast %11 : vector<1x128xf32> to vector<1x128xf32>
    %18 = vector.broadcast %17 : vector<1x128xf32> to vector<4x128xf32>
    %19 = vector.broadcast %cst_5 : f32 to vector<4x128xf32>
    %20 = arith.select %16, %18, %19 : vector<4x128xi1>, vector<4x128xf32>
    %c0_6 = arith.constant 0 : index
    %c0_7 = arith.constant 0 : index
    %c0_8 = arith.constant 0 : index
    %21 = vector.load %arg4[%c0_6, %c0_7, %c0_8] : memref<1x4x8xf32, #tpu.memory_space<vmem>>, vector<1x4x8xf32>
    %22 = vector.shape_cast %21 : vector<1x4x8xf32> to vector<4x8xf32>
    %23 = arith.truncf %20 : vector<4x128xf32> to vector<4x128xbf16>
    %24 = arith.truncf %8 : vector<8x128xf32> to vector<8x128xbf16>
    %cst_9 = arith.constant dense<0.000000e+00> : vector<4x8xf32>
    %25 = tpu.matmul %23, %24, %cst_9 {dimension_numbers = #tpu.dot_dimension_numbers<[1], [1], [0], [0], [0, 0, 1, 0], [], []>} : vector<4x128xbf16>, vector<8x128xbf16>, vector<4x8xf32> -> vector<4x8xf32>
    %26 = arith.addf %22, %25 : vector<4x8xf32>
    %c0_10 = arith.constant 0 : index
    %c0_11 = arith.constant 0 : index
    %c0_12 = arith.constant 0 : index
    %27 = vector.load %arg4[%c0_10, %c0_11, %c0_12] : memref<1x4x8xf32, #tpu.memory_space<vmem>>, vector<1x4x8xf32>
    %28 = vector.shape_cast %27 : vector<1x4x8xf32> to vector<4x8xf32>
    %29 = vector.shape_cast %26 : vector<4x8xf32> to vector<1x4x8xf32>
    tpu.vector_store %arg4[%c0_10, %c0_11, %c0_12], %29 {strides = array<i32>} : memref<1x4x8xf32, #tpu.memory_space<vmem>>, vector<1x4x8xf32>,
    return
  }
  func.func @transform_0(%arg0: i32, %arg1: i32) -> (i32, i32) {
    %c1_i32 = arith.constant 1 : i32
    %0 = arith.muli %arg0, %c1_i32 : i32
    %1 = arith.addi %0, %arg1 : i32
    %c0_i32 = arith.constant 0 : i32
    %c0_i32_0 = arith.constant 0 : i32
    return %c0_i32, %1 : i32, i32
  }
  func.func @transform_1(%arg0: i32, %arg1: i32) -> (i32, i32) {
    %c1_i32 = arith.constant 1 : i32
    %0 = arith.muli %arg0, %c1_i32 : i32
    %1 = arith.addi %0, %arg1 : i32
    %c0_i32 = arith.constant 0 : i32
    %c0_i32_0 = arith.constant 0 : i32
    return %c0_i32, %1 : i32, i32
  }
  func.func @transform_2(%arg0: i32, %arg1: i32) -> (i32, i32, i32) {
    %c0_i32 = arith.constant 0 : i32
    %c0_i32_0 = arith.constant 0 : i32
    %c0_i32_1 = arith.constant 0 : i32
    return %arg0, %c0_i32, %c0_i32_0 : i32, i32, i32
  }
}

</mosaic_0001>

<llo_original>
// kernel: tpu_custom_call.1
$region0: #{tpu_custom_call.1}
  #allocation0 [shape = 'u32[]', space=smem, size = 0x4, offset = 0x4, fixed_abs, tag = 'smem constant byte address 0x4 - core index']
  #allocation1 [shape = 'u32[144,128]{1,0:T(1,128)}', space=vmem, size = 0x12000, scoped, tag = 'internal scratch']
  %s0 = inlined_call_operand.hbm [shape: f32[8,128], index: 0, kind: input, shape index: {}]
  %s1 = inlined_call_operand.vmem [shape: s32[1,128], index: 1, kind: input, shape index: {}]
  %s2 = inlined_call_operand.hbm [shape: f32[1,4,8], index: 2, kind: output, shape index: {}]
  %s3 = sld [smem:[#allocation0]]
  $region26: #{tpu_custom_call.1} parent=0
    _
  %s5 = ssub.s32 1, %s3
  %s6 = scalar_select 0, %s5, %s3
  $region1: #{tpu_custom_call.1} parent=0
    #allocation2 [shape = 'u8[4096]{0}', space=vmem, size = 0x1000, scoped, tag = 'input window, operand 0, single buffered']
    #allocation3 [shape = 's32[1]{0}', space=sflag, size = 0x4, scoped, tag = 'scoped memory for tpu_custom_call.1']
    #allocation4 [shape = 's32[1]{0}', space=sflag, size = 0x4, scoped, tag = 'scoped memory for tpu_custom_call.1']
    #allocation5 [shape = 'u8[2048]{0}', space=vmem, size = 0x800, scoped, tag = 'output window, operand 0, single buffered']
    %7 = vsyncpa [#allocation3], 0
    %8 = vsyncpa [#allocation4], 0
    // Predicated region
    $region2: #{tpu_custom_call.1} parent=1 // pred_check
      _
    $region3: #{tpu_custom_call.1} parent=1 // pred_check_branch
      %10 = sbr.rel (0) target = $region5
    $region4: #{tpu_custom_call.1} parent=1 // pred_region
      %s11 = sadd.s32 0, 0
      %s13 = ssub.s32 128, 128
      %14 = vsyncadd [#allocation3], %s13
      %s15 = smul.addr %s11, 128
      %s16 = scalar_lea.hbm %s0, %s15
      %s18 = sshll.u32 [#allocation2], 4
      %s19 = int_to_ptr.vmem [resolvable:$true] %s18
      %21 = dma.hbm_to_vmem [thread:$0]  %s16, 128, %s19, [#allocation3]
    $region5: #{tpu_custom_call.1} parent=1 // pred_fallthru
      _
    // Predicated region
    $region6: #{tpu_custom_call.1} parent=1 // pred_check
      _
    $region7: #{tpu_custom_call.1} parent=1 // pred_check_branch
      %23 = sbr.rel (0) target = $region9
    $region8: #{tpu_custom_call.1} parent=1 // pred_region
      %s24 = sadd.s32 0, 0
      %p25 = scmp.lt.s32.totalorder %s24, 0
      %s26 = scalar_select %p25, %s24, 0
      %s27 = scalar_lea.vmem %s1, %s26
      %s28 = sadd.s32 0, 0
    $region9: #{tpu_custom_call.1} parent=1 // pred_fallthru
      _
    // Predicated region
    $region10: #{tpu_custom_call.1} parent=1 // pred_check
      _
    $region11: #{tpu_custom_call.1} parent=1 // pred_check_branch
      %30 = sbr.rel (0) target = $region13
    $region12: #{tpu_custom_call.1} parent=1 // pred_region
      %31 = dma.done [#allocation3], 128
    $region13: #{tpu_custom_call.1} parent=1 // pred_fallthru
      _
    %s32 = sadd.s32 0, 0
    %p33 = scmp.lt.s32.totalorder %s32, 0
    %s34 = scalar_select %p33, %s32, 0
    %s35 = scalar_lea.vmem %s1, %s34
    %s36 = sadd.s32 0, 0
    %s37 = sadd.s32 0, 0
    %p38 = scmp.lt.s32.totalorder %s37, 0
    %s39 = scalar_select %p38, %s37, 0
    %s40 = scalar_lea.vmem %s1, %s39
    %s41 = sadd.s32 0, 0
    %p43 = scmp.eq.s32.totalorder 0, 0
    // Predicated region
    $region14: #{tpu_custom_call.1} parent=1 // pred_check
      %p44 = pneg %p43
    $region15: #{tpu_custom_call.1} parent=1 // pred_check_branch
      %46 = sbr.rel (%p44) target = $region17
    $region16: #{tpu_custom_call.1} parent=1 // pred_region
      %vm47 = vcmask 60416
      %48 = vst.msk [vmem:[#allocation5] sm:$0xf] %vm47, 0.0
    $region17: #{tpu_custom_call.1} parent=1 // pred_fallthru
      _
    %v49 = vld [vmem:[#allocation2] sm:$0xff]
    %v50 = vrot.slane %v49, 4
    %v51 = vmax.f32 %v49, %v50
    %v52 = vrot.slane %v51, 2
    %v53 = vmax.f32 %v51, %v52
    %v54 = vrot.slane %v53, 1
    %v55 = vmax.f32 %v53, %v54
    %v56 = vsub.f32 %v49, %v55
    %v57 = vmul.f32 %v56, 1.442695
    %v58 = vpow.pop %v57
    %v59 = vrot.slane %v58, 4
    %v60 = vadd.f32 %v58, %v59
    %v61 = vrot.slane %v60, 2
    %v62 = vadd.f32 %v60, %v61
    %v63 = vrot.slane %v62, 1
    %v64 = vadd.f32 %v62, %v63
    %v65 = vrcp.pop %v64
    %v66 = vld [vmem:[%s40] sm:$0x1]
    %v67 = vlaneseq
    %v68 = vshrl.u32 %v67, 7
    %v69 = vlaneseq
    %v70 = vshrl.u32 %v69, 7
    %v71 = vsub.s32 0, %v70
    %v72 = vrot.slane %v66, %v71
    %vm73 = vcmp.eq.s32.totalorder %v72, %v68
    %v74 = vsel %vm73, %v65, 0.0
    %v75 = vld [vmem:[#allocation5] sm:$0xf]
    %v76 = vpack.c.bf16 %v74, %v74
    %v77 = vpack.c.bf16 %v58, %v58
    %78 = vmatprep.subr.bf16.mxu0 0
    %79 = vmatpush1.bf16.xpose.msra.mxu0 0
    %80 = vmatprep.subr.bf16.mxu0 0
    %81 = vmatpush1.bf16.xpose.msra.mxu0 0
    %82 = vmatprep.subr.bf16.mxu0 0
    %83 = vmatpush1.bf16.xpose.msra.mxu0 0
    %84 = vmatprep.subr.bf16.mxu0 0
    %85 = vmatpush1.bf16.xpose.msra.mxu0 0
    %86 = vmatprep.subr.bf16.mxu0 0
    %87 = vmatpush1.bf16.xpose.msra.mxu0 0
    %88 = vmatprep.subr.bf16.mxu0 0
    %89 = vmatpush1.bf16.xpose.msra.mxu0 0
    %90 = vmatprep.subr.bf16.mxu0 0
    %91 = vmatpush1.bf16.xpose.msra.mxu0 0
    %92 = vmatprep.subr.bf16.mxu0 0
    %93 = vmatpush1.bf16.xpose.msra.mxu0 %v77
    %94 = vmatprep.subr.bf16.mxu0 0
    %95 = vmatpush2.bf16.xpose.msra.mxu0 0
    %96 = vmatprep.subr.bf16.mxu0 0
    %97 = vmatpush2.bf16.xpose.msra.mxu0 0
    %98 = vmatprep.subr.bf16.mxu0 0
    %99 = vmatpush2.bf16.xpose.msra.mxu0 0
    %100 = vmatprep.subr.bf16.mxu0 0
    %101 = vmatpush2.bf16.xpose.msra.mxu0 0
    %102 = vmatprep.subr.bf16.mxu0 0
    %103 = vmatpush2.bf16.xpose.msra.mxu0 0
    %104 = vmatprep.subr.bf16.mxu0 0
    %105 = vmatpush2.bf16.xpose.msra.mxu0 0
    %106 = vmatprep.subr.bf16.mxu0 0
    %107 = vmatpush2.bf16.xpose.msra.mxu0 0
    %108 = vmatprep.subr.bf16.mxu0 0
    %109 = vmatpush2.bf16.xpose.msra.mxu0 0
    %110 = vmatprep.mubr.bf16.mxu0 0
    %111 = vmatmul.mubr.bf16.gmra.mxu0 %v76
    %v112 = vpop.f32.mrf.mxu0
    %v113 = vadd.f32 0.0, %v112
    %v114 = vpop.f32.mrf.mxu0
    %v115 = vpop.f32.mrf.mxu0
    %v116 = vpop.f32.mrf.mxu0
    %117 = vdwg.mxu0
    %v118 = vadd.f32 %v75, %v113
    %vm119 = vcmask 60416
    %120 = vst.msk [vmem:[#allocation5] sm:$0xf] %vm119, %v118
    // Predicated region
    $region18: #{tpu_custom_call.1} parent=1 // pred_check
      _
    $region19: #{tpu_custom_call.1} parent=1 // pred_check_branch
      %122 = sbr.rel (0) target = $region21
    $region20: #{tpu_custom_call.1} parent=1 // pred_region
      %s124 = ssub.s32 64, 64
      %125 = vsyncadd [#allocation4], %s124
      %s127 = sshll.u32 [#allocation5], 4
      %s128 = int_to_ptr.vmem [resolvable:$true] %s127
      %130 = dma.vmem_to_hbm [thread:$0]  %s128, 64, %s2, [#allocation4]
    $region21: #{tpu_custom_call.1} parent=1 // pred_fallthru
      _
    // Predicated region
    $region22: #{tpu_custom_call.1} parent=1 // pred_check
      _
    $region23: #{tpu_custom_call.1} parent=1 // pred_check_branch
      %132 = sbr.rel (0) target = $region25
    $region24: #{tpu_custom_call.1} parent=1 // pred_region
      %133 = dma.done [#allocation4], 64
    $region25: #{tpu_custom_call.1} parent=1 // pred_fallthru
      _
    %134 = vsyncpa [#allocation3], 1
    %135 = vsyncpa [#allocation4], 1

</llo_original>
